<compile_context>
chip_gen: v7x
topology: tpu7x:2x2x1
jax: 0.10.0
libtpu: 0.0.40
codegen_flags: <defaults>
</compile_context>

<pallas_src>
import functools

import jax
import jax.numpy as jnp
from jax.experimental import pallas as pl
from jax.experimental.pallas import tpu as pltpu


# ----------------------------------------------------------------------------
# small helpers
# ----------------------------------------------------------------------------
def _round_up(x, m):
    return (x + m - 1) // m * m


def _pick_m(M):
    """Row tile (multiple of 16 for bf16 sublanes); pad M only when unavoidable."""
    for t in (256, 128, 64, 32, 16):
        if M % t == 0:
            return t, M
    Mp = _round_up(M, 16)
    for t in (256, 128, 64, 32, 16):
        if Mp % t == 0:
            return t, Mp
    return 16, Mp


def _pick_n(N):
    for t in (256, 128):
        if N % t == 0:
            return t
    return N          # small channel counts (64, 6): full-dim lane block


def _pick_k(K):
    for t in (512, 384, 256, 128):
        if K % t == 0:
            return t
    return K          # small K (e.g. 64): single full-dim K step


# ----------------------------------------------------------------------------
# Pallas kernels
# ----------------------------------------------------------------------------
def _mm_bias_kernel(a_ref, b_ref, bias_ref, o_ref, acc_ref, *, relu):
    """bf16 MXU matmul, f32 accumulate, fused bias(+ReLU) epilogue on last K step."""
    @pl.when(pl.program_id(2) == 0)
    def _():
        acc_ref[...] = jnp.zeros_like(acc_ref)

    acc_ref[...] += jnp.dot(a_ref[...], b_ref[...],
                            preferred_element_type=jnp.float32)

    @pl.when(pl.program_id(2) == pl.num_programs(2) - 1)
    def _():
        y = acc_ref[...] + bias_ref[...]
        if relu:
            y = jnp.maximum(y, 0.0)
        o_ref[...] = y.astype(o_ref.dtype)


def _mm_bias_res_relu_kernel(a_ref, b_ref, bias_ref, r_ref, o_ref, acc_ref):
    """Same as above + fused residual add, then ReLU (Bottleneck conv3 epilogue)."""
    @pl.when(pl.program_id(2) == 0)
    def _():
        acc_ref[...] = jnp.zeros_like(acc_ref)

    acc_ref[...] += jnp.dot(a_ref[...], b_ref[...],
                            preferred_element_type=jnp.float32)

    @pl.when(pl.program_id(2) == pl.num_programs(2) - 1)
    def _():
        y = acc_ref[...] + bias_ref[...] + r_ref[...].astype(jnp.float32)
        o_ref[...] = jnp.maximum(y, 0.0).astype(o_ref.dtype)


def _max9_kernel(*refs):
    """Elementwise max tree over 9 shifted views (3x3/stride-2 max pool)."""
    o_ref = refs[-1]
    m = refs[0][...]
    for r in refs[1:-1]:
        m = jnp.maximum(m, r[...])
    o_ref[...] = m


def _gap_kernel(x_ref, o_ref):
    """Global average pool over the spatial axis of one (1, HW, C) block."""
    o_ref[...] = jnp.mean(x_ref[...].astype(jnp.float32), axis=1,
                          keepdims=True).astype(o_ref.dtype)


# ----------------------------------------------------------------------------
# fused matmul wrapper
# ----------------------------------------------------------------------------
def matmul_fused(a, b, bias, residual=None, relu=False):
    """(M,K)@(K,N) + bias (+residual) (+ReLU).  a: any float, b: bf16, bias: (1,N) f32."""
    M, K = a.shape
    _, N = b.shape
    tm, Mp = _pick_m(M)
    tn = _pick_n(N)
    tk = _pick_k(K)

    if Mp != M:
        a = jnp.pad(a, ((0, Mp - M), (0, 0)))
        if residual is not None:
            residual = jnp.pad(residual, ((0, Mp - M), (0, 0)))
    a = a.astype(jnp.bfloat16)

    in_specs = [pl.BlockSpec((tm, tk), lambda i, j, k: (i, k)),
                pl.BlockSpec((tk, tn), lambda i, j, k: (k, j)),
                pl.BlockSpec((1, tn), lambda i, j, k: (0, j))]
    args = [a, b, bias]
    if residual is None:
        kernel = functools.partial(_mm_bias_kernel, relu=relu)
    else:
        kernel = _mm_bias_res_relu_kernel
        in_specs.append(pl.BlockSpec((tm, tn), lambda i, j, k: (i, j)))
        args.append(residual.astype(jnp.bfloat16))

    out = pl.pallas_call(
        kernel,
        out_shape=jax.ShapeDtypeStruct((Mp, N), jnp.bfloat16),
        grid_spec=pltpu.PrefetchScalarGridSpec(
            num_scalar_prefetch=0,
            grid=(Mp // tm, N // tn, K // tk),
            in_specs=in_specs,
            out_specs=pl.BlockSpec((tm, tn), lambda i, j, k: (i, j)),
            scratch_shapes=[pltpu.VMEM((tm, tn), jnp.float32)]),
        compiler_params=pltpu.CompilerParams(
            dimension_semantics=("parallel", "parallel", "arbitrary")),
    )(*args)
    return out[:M] if Mp != M else out


# ----------------------------------------------------------------------------
# NN building blocks (glue in plain JAX, compute in Pallas)
# ----------------------------------------------------------------------------
@functools.partial(jax.jit, static_argnames=("stride", "padding", "kh", "kw", "relu"))
def conv2d(x, w2d, bias, *, stride, padding, kh, kw, relu, residual=None):
    """x: NHWC bf16, w2d: (Kp, Cout) bf16 (BN scale folded, K pre-padded),
    bias: (1, Cout) f32.  im2col (glue) + fused Pallas matmul epilogue."""
    N, H, W, Cin = x.shape
    Kp, Cout = w2d.shape
    Ho = (H + 2 * padding - kh) // stride + 1
    Wo = (W + 2 * padding - kw) // stride + 1

    if kh == 1 and kw == 1 and padding == 0:
        patches = x[:, ::stride, ::stride, :].reshape(-1, Cin)
    else:
        xp = jnp.pad(x, ((0, 0), (padding, padding), (padding, padding), (0, 0)))
        cols = [xp[:, dh:dh + stride * (Ho - 1) + 1:stride,
                   dw:dw + stride * (Wo - 1) + 1:stride, :]
                for dh in range(kh) for dw in range(kw)]
        patches = jnp.concatenate(cols, axis=-1).reshape(-1, kh * kw * Cin)
    if patches.shape[1] != Kp:                      # weight K was padded to 128-multiple
        patches = jnp.pad(patches, ((0, 0), (0, Kp - patches.shape[1])))

    r2d = None if residual is None else residual.reshape(-1, Cout)
    out = matmul_fused(patches, w2d, bias, r2d, relu)
    return out.reshape(N, Ho, Wo, Cout)


@jax.jit
def linear(x, w, b):
    return matmul_fused(x, w, b, None, False)


@jax.jit
def maxpool_3x3_s2_p1(x):
    """NHWC max-pool, kernel 3, stride 2, padding 1 (ResNet stem), row-tiled."""
    N, H, W, C = x.shape
    Ho = (H + 2 - 3) // 2 + 1
    Wo = (W + 2 - 3) // 2 + 1
    xp = jnp.pad(x, ((0, 0), (1, 1), (1, 1), (0, 0)), constant_values=-jnp.inf)
    views = [xp[:, dh:dh + 2 * (Ho - 1) + 1:2, dw:dw + 2 * (Wo - 1) + 1:2, :]
             .reshape(-1, C)
             for dh in range(3) for dw in range(3)]
    M = N * Ho * Wo
    tm, Mp = _pick_m(M)
    if Mp != M:
        views = [jnp.pad(v, ((0, Mp - M), (0, 0))) for v in views]
    out = pl.pallas_call(
        _max9_kernel,
        out_shape=jax.ShapeDtypeStruct((Mp, C), x.dtype),
        grid_spec=pltpu.PrefetchScalarGridSpec(
            num_scalar_prefetch=0,
            grid=(Mp // tm,),
            in_specs=[pl.BlockSpec((tm, C), lambda i: (i, 0))] * 9,
            out_specs=pl.BlockSpec((tm, C), lambda i: (i, 0))),
        compiler_params=pltpu.CompilerParams(dimension_semantics=("parallel",)),
    )(*views)
    if Mp != M:
        out = out[:M]
    return out.reshape(N, Ho, Wo, C)


@jax.jit
def global_avg_pool(x):
    """AdaptiveAvgPool2d((1,1)) + flatten: NHWC -> (N, C), tiled over batch."""
    N, H, W, C = x.shape
    HW = H * W
    x3 = x.reshape(N, HW, C)
    out = pl.pallas_call(
        _gap_kernel,
        out_shape=jax.ShapeDtypeStruct((N, 1, C), x.dtype),
        grid_spec=pltpu.PrefetchScalarGridSpec(
            num_scalar_prefetch=0,
            grid=(N,),
            in_specs=[pl.BlockSpec((1, HW, C), lambda n: (n, 0, 0))],
            out_specs=pl.BlockSpec((1, 1, C), lambda n: (n, 0, 0))),
        compiler_params=pltpu.CompilerParams(dimension_semantics=("parallel",)),
    )(x3)
    return out.reshape(N, C)


def bottleneck_forward(x, p):
    out = conv2d(x, p["conv1_w"], p["conv1_b"],
                 stride=1, padding=0, kh=1, kw=1, relu=True)
    out = conv2d(out, p["conv2_w"], p["conv2_b"],
                 stride=p["stride"], padding=1, kh=3, kw=3, relu=True)
    if "down_w" in p:
        identity = conv2d(x, p["down_w"], p["down_b"],
                          stride=p["stride"], padding=0, kh=1, kw=1, relu=False)
    else:
        identity = x
    return conv2d(out, p["conv3_w"], p["conv3_b"],
                  stride=1, padding=0, kh=1, kw=1, relu=True, residual=identity)


def net_forward(x_nchw, params):
    """Net.forward: resnet152(x) followed by fc1 (1000 -> 6)."""
    x = jnp.transpose(x_nchw, (0, 2, 3, 1)).astype(jnp.bfloat16)   # NCHW -> NHWC
    x = conv2d(x, params["conv1_w"], params["conv1_b"],
               stride=2, padding=3, kh=7, kw=7, relu=True)
    x = maxpool_3x3_s2_p1(x)
    for layer in ("layer1", "layer2", "layer3", "layer4"):
        for blk in params[layer]:
            x = bottleneck_forward(x, blk)
    x = global_avg_pool(x)                               # (N, 2048)
    x = linear(x, params["fc_w"], params["fc_b"])        # (N, 1024): cols 1000.. are 0
    x = linear(x, params["fc1_w"], params["fc1_b"])      # (N, 6)     Net.fc1
    return x.astype(jnp.float32)


# ----------------------------------------------------------------------------
# Deterministic synthetic parameters with exact ResNet-152 shapes
# (BN scale folded into weights, K pre-padded to 128-multiples, weights bf16)
# ----------------------------------------------------------------------------
class ParamGen:
    def __init__(self, seed):
        self.key = jax.random.PRNGKey(seed)

    def _next(self):
        self.key, sub = jax.random.split(self.key)
        return sub

    def conv_bn(self, kh, kw, cin, cout):
        std = (2.0 / (kh * kw * cin)) ** 0.5
        w = std * jax.random.normal(self._next(), (kh, kw, cin, cout), jnp.float32)
        gamma = 0.1 + 0.2 * jax.random.uniform(self._next(), (cout,), jnp.float32)
        beta = 0.01 * jax.random.normal(self._next(), (cout,), jnp.float32)
        scale = gamma / jnp.sqrt(1.0 + 1e-5)          # inference-mode BN fold
        K = kh * kw * cin
        w2d = w.reshape(K, cout) * scale[None, :]
        Kp = K if K < 128 else _round_up(K, 128)
        if Kp != K:
            w2d = jnp.pad(w2d, ((0, Kp - K), (0, 0)))
        return w2d.astype(jnp.bfloat16), beta.reshape(1, cout).astype(jnp.float32)

    def dense(self, cin, cout, cin_pad=None, cout_pad=None):
        std = (1.0 / cin) ** 0.5
        w = std * jax.random.normal(self._next(), (cin, cout), jnp.float32)
        b = 0.01 * jax.random.normal(self._next(), (cout,), jnp.float32)
        if cout_pad:
            w = jnp.pad(w, ((0, 0), (0, cout_pad - cout)))
            b = jnp.pad(b, (0, cout_pad - cout))
        if cin_pad:
            w = jnp.pad(w, ((0, cin_pad - cin), (0, 0)))
        return w.astype(jnp.bfloat16), b.reshape(1, -1).astype(jnp.float32)


def make_bottleneck_params(pg, inplanes, planes, stride):
    p = {"stride": stride}
    p["conv1_w"], p["conv1_b"] = pg.conv_bn(1, 1, inplanes, planes)
    p["conv2_w"], p["conv2_b"] = pg.conv_bn(3, 3, planes, planes)
    p["conv3_w"], p["conv3_b"] = pg.conv_bn(1, 1, planes, planes * 4)
    if stride != 1 or inplanes != planes * 4:
        p["down_w"], p["down_b"] = pg.conv_bn(1, 1, inplanes, planes * 4)
    return p


def make_net_params(seed=1):
    pg = ParamGen(seed)
    params = {}
    params["conv1_w"], params["conv1_b"] = pg.conv_bn(7, 7, 3, 64)
    inplanes = 64
    for li, (planes, nblocks, stride) in enumerate(
            [(64, 3, 1), (128, 8, 2), (256, 36, 2), (512, 3, 2)], start=1):
        blocks = []
        for b in range(nblocks):
            s = stride if b == 0 else 1
            blocks.append(make_bottleneck_params(pg, inplanes, planes, s))
            inplanes = planes * 4
        params[f"layer{li}"] = blocks
    # torchvision resnet152.fc: 2048 -> 1000 (out padded to 1024 lanes, zeros)
    params["fc_w"], params["fc_b"] = pg.dense(2048, 1000, cout_pad=1024)
    # Net.fc1: 1000 -> 6 (in padded to 1024 with zero rows to match fc output)
    params["fc1_w"], params["fc1_b"] = pg.dense(1000, 6, cin_pad=1024)
    return params


# ----------------------------------------------------------------------------
if __name__ == "__main__":
    params = make_net_params(seed=1)
    x = jax.random.normal(jax.random.PRNGKey(0), (2, 3, 32, 32), jnp.float32)
    out = net_forward(x, params)
    out = jax.block_until_ready(out)
    assert out.shape == (2, 6), out.shape
    assert bool(jnp.all(jnp.isfinite(out)))
    print("KERNEL_OK")
</pallas_src>

<mosaic_0001>
module attributes {stable_mosaic.version = 11 : i64} {
  func.func @_mm_bias_kernel(%arg0: i32, %arg1: i32, %arg2: i32, %arg3: memref<256x256xbf16, #tpu.memory_space<vmem>>, %arg4: memref<256x64xbf16, #tpu.memory_space<vmem>>, %arg5: memref<1x64xf32, #tpu.memory_space<vmem>>, %arg6: memref<256x64xbf16, #tpu.memory_space<vmem>>, %arg7: memref<256x64xf32, #tpu.memory_space<vmem>>) attributes {dimension_semantics = [#tpu.dimension_semantics<parallel>, #tpu.dimension_semantics<parallel>, #tpu.dimension_semantics<arbitrary>], iteration_bounds = array<i64: 2, 1, 1>, scalar_prefetch = 0 : i64, scratch_operands = 1 : i64, tpu.core_type = #tpu.core_type<tc>, window_params = [{transform_indices = @transform_0, window_bounds = array<i64: 256, 256>}, {transform_indices = @transform_1, window_bounds = array<i64: 256, 64>}, {transform_indices = @transform_2, window_bounds = array<i64: 1, 64>}, {transform_indices = @transform_3, window_bounds = array<i64: 256, 64>}]} {
    %c0_i32 = arith.constant 0 : i32
    %0 = arith.cmpi eq, %arg2, %c0_i32 : i32
    %1 = arith.extui %0 : i1 to i32
    %c0_i32_0 = arith.constant 0 : i32
    %2 = arith.cmpi ne, %1, %c0_i32_0 : i32
    scf.if %2 {
      %cst_10 = arith.constant 0.000000e+00 : f32
      %12 = vector.broadcast %cst_10 : f32 to vector<256x64xf32>
      %c0_11 = arith.constant 0 : index
      %c0_12 = arith.constant 0 : index
      %13 = vector.load %arg7[%c0_11, %c0_12] : memref<256x64xf32, #tpu.memory_space<vmem>>, vector<256x64xf32>
      tpu.vector_store %arg7[%c0_11, %c0_12], %12 {strides = array<i32>} : memref<256x64xf32, #tpu.memory_space<vmem>>, vector<256x64xf32>,
    } else {
    }
    %c0 = arith.constant 0 : index
    %c0_1 = arith.constant 0 : index
    %3 = vector.load %arg7[%c0, %c0_1] : memref<256x64xf32, #tpu.memory_space<vmem>>, vector<256x64xf32>
    %c0_2 = arith.constant 0 : index
    %c0_3 = arith.constant 0 : index
    %4 = vector.load %arg3[%c0_2, %c0_3] : memref<256x256xbf16, #tpu.memory_space<vmem>>, vector<256x256xbf16>
    %c0_4 = arith.constant 0 : index
    %c0_5 = arith.constant 0 : index
    %5 = vector.load %arg4[%c0_4, %c0_5] : memref<256x64xbf16, #tpu.memory_space<vmem>>, vector<256x64xbf16>
    %cst = arith.constant dense<0.000000e+00> : vector<256x64xf32>
    %6 = tpu.matmul %4, %5, %cst {dimension_numbers = #tpu.dot_dimension_numbers<[1], [0], [0], [1], [0, 0, 1, 1], [], []>} : vector<256x256xbf16>, vector<256x64xbf16>, vector<256x64xf32> -> vector<256x64xf32>
    %7 = arith.addf %3, %6 : vector<256x64xf32>
    %c0_6 = arith.constant 0 : index
    %c0_7 = arith.constant 0 : index
    %8 = vector.load %arg7[%c0_6, %c0_7] : memref<256x64xf32, #tpu.memory_space<vmem>>, vector<256x64xf32>
    tpu.vector_store %arg7[%c0_6, %c0_7], %7 {strides = array<i32>} : memref<256x64xf32, #tpu.memory_space<vmem>>, vector<256x64xf32>,
    %c0_i32_8 = arith.constant 0 : i32
    %9 = arith.cmpi eq, %arg2, %c0_i32_8 : i32
    %10 = arith.extui %9 : i1 to i32
    %c0_i32_9 = arith.constant 0 : i32
    %11 = arith.cmpi ne, %10, %c0_i32_9 : i32
    scf.if %11 {
      %c0_10 = arith.constant 0 : index
      %c0_11 = arith.constant 0 : index
      %12 = vector.load %arg7[%c0_10, %c0_11] : memref<256x64xf32, #tpu.memory_space<vmem>>, vector<256x64xf32>
      %c0_12 = arith.constant 0 : index
      %c0_13 = arith.constant 0 : index
      %13 = vector.load %arg5[%c0_12, %c0_13] : memref<1x64xf32, #tpu.memory_space<vmem>>, vector<1x64xf32>
      %14 = vector.broadcast %13 : vector<1x64xf32> to vector<256x64xf32>
      %15 = arith.addf %12, %14 : vector<256x64xf32>
      %cst_14 = arith.constant 0.000000e+00 : f32
      %16 = vector.broadcast %cst_14 : f32 to vector<256x64xf32>
      %17 = arith.maximumf %15, %16 : vector<256x64xf32>
      %18 = arith.truncf %17 : vector<256x64xf32> to vector<256x64xbf16>
      %c0_15 = arith.constant 0 : index
      %c0_16 = arith.constant 0 : index
      %19 = vector.load %arg6[%c0_15, %c0_16] : memref<256x64xbf16, #tpu.memory_space<vmem>>, vector<256x64xbf16>
      tpu.vector_store %arg6[%c0_15, %c0_16], %18 {strides = array<i32>} : memref<256x64xbf16, #tpu.memory_space<vmem>>, vector<256x64xbf16>,
    } else {
    }
    return
  }
  func.func @transform_0(%arg0: i32, %arg1: i32, %arg2: i32) -> (i32, i32) {
    %c0_i32 = arith.constant 0 : i32
    return %arg0, %arg2 : i32, i32
  }
  func.func @transform_1(%arg0: i32, %arg1: i32, %arg2: i32) -> (i32, i32) {
    %c0_i32 = arith.constant 0 : i32
    return %arg2, %arg1 : i32, i32
  }
  func.func @transform_2(%arg0: i32, %arg1: i32, %arg2: i32) -> (i32, i32) {
    %c0_i32 = arith.constant 0 : i32
    %c0_i32_0 = arith.constant 0 : i32
    return %c0_i32, %arg1 : i32, i32
  }
  func.func @transform_3(%arg0: i32, %arg1: i32, %arg2: i32) -> (i32, i32) {
    %c0_i32 = arith.constant 0 : i32
    return %arg0, %arg1 : i32, i32
  }
}

</mosaic_0001>

<llo_original>
// kernel: conv2d.1
$region0: #{conv2d.1}
  #allocation0 [shape = 'u32[]', space=smem, size = 0x4, offset = 0x4, fixed_abs, tag = 'smem constant byte address 0x4 - core index']
  #allocation1 [shape = 'u32[144,128]{1,0:T(1,128)}', space=vmem, size = 0x12000, scoped, tag = 'internal scratch']
  #allocation2 [shape = 'f32[256,64]{1,0:T(8,128)}', space=vmem, size = 0x20000, scoped, tag = 'scratch operand']
  %s0 = inlined_call_operand.vmem [shape: bf16[512,256], index: 0, kind: input, shape index: {}]
  %s1 = inlined_call_operand.vmem [shape: bf16[256,64], index: 1, kind: input, shape index: {}]
  %s2 = inlined_call_operand.vmem [shape: f32[1,64], index: 2, kind: input, shape index: {}]
  %s3 = inlined_call_operand.hbm [shape: bf16[512,64], index: 3, kind: output, shape index: {}]
  %s4 = sld [smem:[#allocation0]]
  $region53: #{conv2d.1} parent=0
    _
  %s6 = ssub.s32 1, %s4
  %s7 = scalar_select 0, %s6, %s4
  $region1: #{conv2d.1} parent=0
    #allocation3 [shape = 'u8[131072]{0}', space=vmem, size = 0x20000, scoped, tag = 'output window, operand 0']
    #allocation4 [shape = 's32[2]{0}', space=sflag, size = 0x8, scoped, tag = 'scoped memory for conv2d.1']
    %8 = vsyncpa [#allocation4], 0
    %s9 = scalar_lea.sflag [#allocation4], 1
    %10 = vsyncpa %s9, 0
    loop: start=0, step=1, limit=4
    $region2: #{conv2d.1} parent=1 // loop_pre_header
      _
    $region3: #{conv2d.1} parent=1 // loop_header
      %s12 = sphi 0, %s16
      %p13 = scmp.ge.s32.totalorder %s12, 4
      %s19 = sphi 0, %s38
      %s20 = sphi 0, %s34
      %s21 = sphi 0, %s30
      %s22 = sphi 0, %s19
      %s23 = sphi 0, %s20
      %s24 = sphi 0, %s21
      %s25 = sphi 0, %s22
      %s26 = sphi 0, %s23
      %s27 = sphi 0, %s24
      %s43 = sphi 0, %s45
      %s46 = sphi 0, %s43
      %s47 = sphi 0, %s46
      %s63 = sphi 0, %s47
      %s71 = sphi 0, %s73
      %s74 = sphi 0, %s71
      %s75 = sphi 0, %s74
      %s91 = sphi 0, %s75
      %s97 = sphi 0, %s99
      %s100 = sphi 0, %s97
      %s101 = sphi 0, %s100
      %s117 = sphi 0, %s101
      %s125 = sphi 0, %s127
      %s128 = sphi 0, %s125
      %s129 = sphi 0, %s128
      %s145 = sphi 0, %s129
    $region4: #{conv2d.1} parent=1 // loop_header_branch
      %15 = sbr.rel (%p13) target = $region8
    $region5: #{conv2d.1} parent=1 // loop_body
      %s17 = ssub.s32 %s12, 1
      %s18 = ssub.s32 %s12, 2
      %s28 = sadd.s32 1, %s21
      %p29 = scmp.ge.s32.totalorder %s28, 1
      %s30 = scalar_select %p29, 0, %s28
      %s31 = sadd.s32 1, %s20
      %s32 = scalar_select %p29, %s31, %s20
      %p33 = scmp.ge.s32.totalorder %s32, 1
      %s34 = scalar_select %p33, 0, %s32
      %s35 = sadd.s32 1, %s19
      %s36 = scalar_select %p33, %s35, %s19
      %p37 = scmp.ge.s32.totalorder %s36, 2
      %s38 = scalar_select %p37, 0, %s36
      %s39 = ssub.s32 %s19, %s38
      %s40 = ssub.s32 %s21, %s30
      %s41 = sor.u32 %s39, %s40
      %p42 = scmp.eq.s32.totalorder %s41, 0
      %s44 = sadd.s32 %s43, 1
      %s45 = scalar_select %p42, %s43, %s44
      %p48 = pneg %p42
      %p49 = scmp.eq.s32.totalorder %s12, 1
      %p50 = por %p48, %p49
      %p51 = scmp.ne.s32.totalorder %s43, %s46
      %p52 = scmp.eq.s32.totalorder %s12, 0
      %p53 = por %p51, %p52
      %p54 = scmp.ne.s32.totalorder %s43, %s46
      %p55 = scmp.eq.s32.totalorder %s17, 1
      %p56 = por %p54, %p55
      %p57 = scmp.ne.s32.totalorder %s46, %s47
      %p58 = scmp.eq.s32.totalorder %s17, 0
      %p59 = por %p57, %p58
      %p60 = scmp.ne.s32.totalorder %s46, %s47
      %p61 = scmp.eq.s32.totalorder %s18, 1
      %p62 = por %p60, %p61
      %p64 = scmp.ne.s32.totalorder %s47, %s63
      %p65 = scmp.eq.s32.totalorder %s18, 0
      %p66 = por %p64, %p65
      %s67 = ssub.s32 %s21, %s30
      %s68 = ssub.s32 %s20, %s34
      %s69 = sor.u32 %s67, %s68
      %p70 = scmp.eq.s32.totalorder %s69, 0
      %s72 = sadd.s32 %s71, 1
      %s73 = scalar_select %p70, %s71, %s72
      %p76 = pneg %p70
      %p77 = scmp.eq.s32.totalorder %s12, 1
      %p78 = por %p76, %p77
      %p79 = scmp.ne.s32.totalorder %s71, %s74
      %p80 = scmp.eq.s32.totalorder %s12, 0
      %p81 = por %p79, %p80
      %p82 = scmp.ne.s32.totalorder %s71, %s74
      %p83 = scmp.eq.s32.totalorder %s17, 1
      %p84 = por %p82, %p83
      %p85 = scmp.ne.s32.totalorder %s74, %s75
      %p86 = scmp.eq.s32.totalorder %s17, 0
      %p87 = por %p85, %p86
      %p88 = scmp.ne.s32.totalorder %s74, %s75
      %p89 = scmp.eq.s32.totalorder %s18, 1
      %p90 = por %p88, %p89
      %p92 = scmp.ne.s32.totalorder %s75, %s91
      %p93 = scmp.eq.s32.totalorder %s18, 0
      %p94 = por %p92, %p93
      %s95 = ssub.s32 %s20, %s34
      %p96 = scmp.eq.s32.totalorder %s95, 0
      %s98 = sadd.s32 %s97, 1
      %s99 = scalar_select %p96, %s97, %s98
      %p102 = pneg %p96
      %p103 = scmp.eq.s32.totalorder %s12, 1
      %p104 = por %p102, %p103
      %p105 = scmp.ne.s32.totalorder %s97, %s100
      %p106 = scmp.eq.s32.totalorder %s12, 0
      %p107 = por %p105, %p106
      %p108 = scmp.ne.s32.totalorder %s97, %s100
      %p109 = scmp.eq.s32.totalorder %s17, 1
      %p110 = por %p108, %p109
      %p111 = scmp.ne.s32.totalorder %s100, %s101
      %p112 = scmp.eq.s32.totalorder %s17, 0
      %p113 = por %p111, %p112
      %p114 = scmp.ne.s32.totalorder %s100, %s101
      %p115 = scmp.eq.s32.totalorder %s18, 1
      %p116 = por %p114, %p115
      %p118 = scmp.ne.s32.totalorder %s101, %s117
      %p119 = scmp.eq.s32.totalorder %s18, 0
      %p120 = por %p118, %p119
      %s121 = ssub.s32 %s19, %s38
      %s122 = ssub.s32 %s20, %s34
      %s123 = sor.u32 %s121, %s122
      %p124 = scmp.eq.s32.totalorder %s123, 0
      %s126 = sadd.s32 %s125, 1
      %s127 = scalar_select %p124, %s125, %s126
      %p130 = pneg %p124
      %p131 = scmp.eq.s32.totalorder %s12, 1
      %p132 = por %p130, %p131
      %p133 = scmp.ne.s32.totalorder %s125, %s128
      %p134 = scmp.eq.s32.totalorder %s12, 0
      %p135 = por %p133, %p134
      %p136 = scmp.ne.s32.totalorder %s125, %s128
      %p137 = scmp.eq.s32.totalorder %s17, 1
      %p138 = por %p136, %p137
      %p139 = scmp.ne.s32.totalorder %s128, %s129
      %p140 = scmp.eq.s32.totalorder %s17, 0
      %p141 = por %p139, %p140
      %p142 = scmp.ne.s32.totalorder %s128, %s129
      %p143 = scmp.eq.s32.totalorder %s18, 1
      %p144 = por %p142, %p143
      %p146 = scmp.ne.s32.totalorder %s129, %s145
      %p147 = scmp.eq.s32.totalorder %s18, 0
      %p148 = por %p146, %p147
      %p149 = scmp.le.s32.totalorder 1, %s12
      %p150 = scmp.lt.s32.totalorder %s12, 3
      %p151 = pnand %p149, %p150
      %p152 = pneg %p151
      // Predicated region
      $region9: #{conv2d.1} parent=5 // pred_check
        _
      $region10: #{conv2d.1} parent=5 // pred_check_branch
        %154 = sbr.rel (%p151) target = $region12
      $region11: #{conv2d.1} parent=5 // pred_region
        %s155 = ssub.s32 %s12, 1
        // Predicated region
        $region13: #{conv2d.1} parent=11 // pred_check
          %p156 = pneg %p87
        $region14: #{conv2d.1} parent=11 // pred_check_branch
          %158 = sbr.rel (%p156) target = $region16
        $region15: #{conv2d.1} parent=11 // pred_region
          %s159 = smul.u32 32, %s24
          %p160 = scmp.lt.s32.totalorder %s159, 31
          %s161 = scalar_select %p160, %s159, 31
          %p162 = scmp.lt.s32.totalorder %s23, 0
          %s163 = scalar_select %p162, %s23, 0
          %s164 = sadd.s32 %s163, %s161
          %s165 = smul.addr %s164, 4
          %s166 = scalar_lea.vmem %s1, %s165
          %s167 = smul.u32 32, %s24
        $region16: #{conv2d.1} parent=11 // pred_fallthru
          _
        // Predicated region
        $region17: #{conv2d.1} parent=11 // pred_check
          %p168 = pneg %p113
        $region18: #{conv2d.1} parent=11 // pred_check_branch
          %170 = sbr.rel (%p168) target = $region20
        $region19: #{conv2d.1} parent=11 // pred_region
          %p171 = scmp.lt.s32.totalorder %s23, 0
          %s172 = scalar_select %p171, %s23, 0
          %s173 = scalar_lea.vmem %s2, %s172
        $region20: #{conv2d.1} parent=11 // pred_fallthru
          _
      $region12: #{conv2d.1} parent=5 // pred_fallthru
        _
      %p174 = scmp.lt.s32.totalorder %s12, 2
      // Predicated region
      $region21: #{conv2d.1} parent=5 // pred_check
        %p175 = pneg %p174
      $region22: #{conv2d.1} parent=5 // pred_check_branch
        %177 = sbr.rel (%p175) target = $region24
      $region23: #{conv2d.1} parent=5 // pred_region
        // Predicated region
        $region25: #{conv2d.1} parent=23 // pred_check
          %p178 = pneg %p53
        $region26: #{conv2d.1} parent=23 // pred_check_branch
          %180 = sbr.rel (%p178) target = $region28
        $region27: #{conv2d.1} parent=23 // pred_region
          %s181 = smul.u32 32, %s19
          %s182 = smul.u32 2, %s21
          %p183 = scmp.lt.s32.totalorder %s181, 63
          %s184 = scalar_select %p183, %s181, 63
          %p185 = scmp.lt.s32.totalorder %s182, 1
          %s186 = scalar_select %p185, %s182, 1
          %s187 = smul.addr %s184, 2
          %s188 = sadd.s32 %s186, %s187
          %s189 = smul.addr %s188, 4
          %s190 = scalar_lea.vmem %s0, %s189
          %s191 = smul.u32 32, %s19
          %s192 = smul.u32 2, %s21
        $region28: #{conv2d.1} parent=23 // pred_fallthru
          _
      $region24: #{conv2d.1} parent=5 // pred_fallthru
        _
      %p193 = scmp.le.s32.totalorder 1, %s12
      %p194 = scmp.lt.s32.totalorder %s12, 3
      %p195 = pnand %p193, %p194
      %p196 = pneg %p195
      // Predicated region
      $region29: #{conv2d.1} parent=5 // pred_check
        _
      $region30: #{conv2d.1} parent=5 // pred_check_branch
        %198 = sbr.rel (%p195) target = $region32
      $region31: #{conv2d.1} parent=5 // pred_region
        %s199 = ssub.s32 %s12, 1
        %s200 = smul.u32 32, %s22
        %s201 = smul.u32 2, %s24
        %p202 = scmp.lt.s32.totalorder %s200, 63
        %s203 = scalar_select %p202, %s200, 63
        %p204 = scmp.lt.s32.totalorder %s201, 1
        %s205 = scalar_select %p204, %s201, 1
        %s206 = smul.addr %s203, 2
        %s207 = sadd.s32 %s205, %s206
        %s208 = smul.addr %s207, 4
        %s209 = scalar_lea.vmem %s0, %s208
        %p210 = pneg %p59
        %p211 = pneg %p56
        %s212 = smul.u32 32, %s24
        %p213 = scmp.lt.s32.totalorder %s212, 31
        %s214 = scalar_select %p213, %s212, 31
        %p215 = scmp.lt.s32.totalorder %s23, 0
        %s216 = scalar_select %p215, %s23, 0
        %s217 = sadd.s32 %s216, %s214
        %s218 = smul.addr %s217, 4
        %s219 = scalar_lea.vmem %s1, %s218
        %p220 = pneg %p87
        %p221 = pneg %p84
        %p222 = scmp.lt.s32.totalorder %s23, 0
        %s223 = scalar_select %p222, %s23, 0
        %s224 = scalar_lea.vmem %s2, %s223
        %p225 = pneg %p113
        %p226 = pneg %p110
        %p227 = pneg %p141
        %p228 = pneg %p138
        %s229 = sand.u32 %s128, 1
        %s230 = scalar_lea.sflag [#allocation4], %s229
        %s231 = sand.u32 %s128, 1
        %s232 = smul.addr %s231, 128
        %s233 = scalar_lea.vmem [#allocation3], %s232
        %s234 = smul.u32 32, %s22
        %s235 = smul.u32 2, %s24
        %p236 = scmp.lt.s32.totalorder %s234, 63
        %s237 = scalar_select %p236, %s234, 63
        %p238 = scmp.lt.s32.totalorder %s235, 1
        %s239 = scalar_select %p238, %s235, 1
        %s240 = smul.addr %s237, 2
        %s241 = sadd.s32 %s239, %s240
        %s242 = smul.addr %s241, 4
        %s243 = scalar_lea.vmem %s0, %s242
        %s244 = smul.u32 32, %s22
        %s245 = smul.u32 2, %s24
        %s246 = smul.u32 32, %s24
        %p247 = scmp.lt.s32.totalorder %s246, 31
        %s248 = scalar_select %p247, %s246, 31
        %p249 = scmp.lt.s32.totalorder %s23, 0
        %s250 = scalar_select %p249, %s23, 0
        %s251 = sadd.s32 %s250, %s248
        %s252 = smul.addr %s251, 4
        %s253 = scalar_lea.vmem %s1, %s252
        %s254 = smul.u32 32, %s24
        %p255 = scmp.lt.s32.totalorder %s23, 0
        %s256 = scalar_select %p255, %s23, 0
        %s257 = scalar_lea.vmem %s2, %s256
        %s258 = smul.u32 32, %s22
        %p260 = scmp.eq.s32.totalorder %s24, 0
        // Predicated region
        $region33: #{conv2d.1} parent=31 // pred_check
          %p261 = pneg %p260
        $region34: #{conv2d.1} parent=31 // pred_check_branch
          %263 = sbr.rel (%p261) target = $region36
        $region35: #{conv2d.1} parent=31 // pred_region
          %vm264 = vcmask 523264
          %265 = vst.msk [vmem:[#allocation2] sm:$0xff] %vm264, 0.0
          %266 = vst.msk [vmem:[#allocation2 + $0x8] sm:$0xff] %vm264, 0.0
          %267 = vst.msk [vmem:[#allocation2 + $0x10] sm:$0xff] %vm264, 0.0
          %268 = vst.msk [vmem:[#allocation2 + $0x18] sm:$0xff] %vm264, 0.0
          %269 = vst.msk [vmem:[#allocation2 + $0x20] sm:$0xff] %vm264, 0.0
          %270 = vst.msk [vmem:[#allocation2 + $0x28] sm:$0xff] %vm264, 0.0
          %271 = vst.msk [vmem:[#allocation2 + $0x30] sm:$0xff] %vm264, 0.0
          %272 = vst.msk [vmem:[#allocation2 + $0x38] sm:$0xff] %vm264, 0.0
          %273 = vst.msk [vmem:[#allocation2 + $0x40] sm:$0xff] %vm264, 0.0
          %274 = vst.msk [vmem:[#allocation2 + $0x48] sm:$0xff] %vm264, 0.0
          %275 = vst.msk [vmem:[#allocation2 + $0x50] sm:$0xff] %vm264, 0.0
          %276 = vst.msk [vmem:[#allocation2 + $0x58] sm:$0xff] %vm264, 0.0
          %277 = vst.msk [vmem:[#allocation2 + $0x60] sm:$0xff] %vm264, 0.0
          %278 = vst.msk [vmem:[#allocation2 + $0x68] sm:$0xff] %vm264, 0.0
          %279 = vst.msk [vmem:[#allocation2 + $0x70] sm:$0xff] %vm264, 0.0
          %280 = vst.msk [vmem:[#allocation2 + $0x78] sm:$0xff] %vm264, 0.0
          %281 = vst.msk [vmem:[#allocation2 + $0x80] sm:$0xff] %vm264, 0.0
          %282 = vst.msk [vmem:[#allocation2 + $0x88] sm:$0xff] %vm264, 0.0
          %283 = vst.msk [vmem:[#allocation2 + $0x90] sm:$0xff] %vm264, 0.0
          %284 = vst.msk [vmem:[#allocation2 + $0x98] sm:$0xff] %vm264, 0.0
          %285 = vst.msk [vmem:[#allocation2 + $0xa0] sm:$0xff] %vm264, 0.0
          %286 = vst.msk [vmem:[#allocation2 + $0xa8] sm:$0xff] %vm264, 0.0
          %287 = vst.msk [vmem:[#allocation2 + $0xb0] sm:$0xff] %vm264, 0.0
          %288 = vst.msk [vmem:[#allocation2 + $0xb8] sm:$0xff] %vm264, 0.0
          %289 = vst.msk [vmem:[#allocation2 + $0xc0] sm:$0xff] %vm264, 0.0
          %290 = vst.msk [vmem:[#allocation2 + $0xc8] sm:$0xff] %vm264, 0.0
          %291 = vst.msk [vmem:[#allocation2 + $0xd0] sm:$0xff] %vm264, 0.0
          %292 = vst.msk [vmem:[#allocation2 + $0xd8] sm:$0xff] %vm264, 0.0
          %293 = vst.msk [vmem:[#allocation2 + $0xe0] sm:$0xff] %vm264, 0.0
          %294 = vst.msk [vmem:[#allocation2 + $0xe8] sm:$0xff] %vm264, 0.0
          %295 = vst.msk [vmem:[#allocation2 + $0xf0] sm:$0xff] %vm264, 0.0
          %296 = vst.msk [vmem:[#allocation2 + $0xf8] sm:$0xff] %vm264, 0.0
        $region36: #{conv2d.1} parent=31 // pred_fallthru
          _
        %v297 = vld [vmem:[#allocation2] sm:$0xff]
        %v298 = vld [vmem:[#allocation2 + $0x8] sm:$0xff]
        %v299 = vld [vmem:[#allocation2 + $0x10] sm:$0xff]
        %v300 = vld [vmem:[#allocation2 + $0x18] sm:$0xff]
        %v301 = vld [vmem:[#allocation2 + $0x20] sm:$0xff]
        %v302 = vld [vmem:[#allocation2 + $0x28] sm:$0xff]
        %v303 = vld [vmem:[#allocation2 + $0x30] sm:$0xff]
        %v304 = vld [vmem:[#allocation2 + $0x38] sm:$0xff]
        %v305 = vld [vmem:[#allocation2 + $0x40] sm:$0xff]
        %v306 = vld [vmem:[#allocation2 + $0x48] sm:$0xff]
        %v307 = vld [vmem:[#allocation2 + $0x50] sm:$0xff]
        %v308 = vld [vmem:[#allocation2 + $0x58] sm:$0xff]
        %v309 = vld [vmem:[#allocation2 + $0x60] sm:$0xff]
        %v310 = vld [vmem:[#allocation2 + $0x68] sm:$0xff]
        %v311 = vld [vmem:[#allocation2 + $0x70] sm:$0xff]
        %v312 = vld [vmem:[#allocation2 + $0x78] sm:$0xff]
        %v313 = vld [vmem:[#allocation2 + $0x80] sm:$0xff]
        %v314 = vld [vmem:[#allocation2 + $0x88] sm:$0xff]
        %v315 = vld [vmem:[#allocation2 + $0x90] sm:$0xff]
        %v316 = vld [vmem:[#allocation2 + $0x98] sm:$0xff]
        %v317 = vld [vmem:[#allocation2 + $0xa0] sm:$0xff]
        %v318 = vld [vmem:[#allocation2 + $0xa8] sm:$0xff]
        %v319 = vld [vmem:[#allocation2 + $0xb0] sm:$0xff]
        %v320 = vld [vmem:[#allocation2 + $0xb8] sm:$0xff]
        %v321 = vld [vmem:[#allocation2 + $0xc0] sm:$0xff]
        %v322 = vld [vmem:[#allocation2 + $0xc8] sm:$0xff]
        %v323 = vld [vmem:[#allocation2 + $0xd0] sm:$0xff]
        %v324 = vld [vmem:[#allocation2 + $0xd8] sm:$0xff]
        %v325 = vld [vmem:[#allocation2 + $0xe0] sm:$0xff]
        %v326 = vld [vmem:[#allocation2 + $0xe8] sm:$0xff]
        %v327 = vld [vmem:[#allocation2 + $0xf0] sm:$0xff]
        %v328 = vld [vmem:[#allocation2 + $0xf8] sm:$0xff]
        %v329 = vld [vmem:[%s243] sm:$0xff]
        %v330 = vld [vmem:[%s243 + $0x8] sm:$0xff]
        %v331 = vld [vmem:[%s243 + $0x10] sm:$0xff]
        %v332 = vld [vmem:[%s243 + $0x18] sm:$0xff]
        %v333 = vld [vmem:[%s243 + $0x20] sm:$0xff]
        %v334 = vld [vmem:[%s243 + $0x28] sm:$0xff]
        %v335 = vld [vmem:[%s243 + $0x30] sm:$0xff]
        %v336 = vld [vmem:[%s243 + $0x38] sm:$0xff]
        %v337 = vld [vmem:[%s243 + $0x40] sm:$0xff]
        %v338 = vld [vmem:[%s243 + $0x48] sm:$0xff]
        %v339 = vld [vmem:[%s243 + $0x50] sm:$0xff]
        %v340 = vld [vmem:[%s243 + $0x58] sm:$0xff]
        %v341 = vld [vmem:[%s243 + $0x60] sm:$0xff]
        %v342 = vld [vmem:[%s243 + $0x68] sm:$0xff]
        %v343 = vld [vmem:[%s243 + $0x70] sm:$0xff]
        %v344 = vld [vmem:[%s243 + $0x78] sm:$0xff]
        %v345 = vld [vmem:[%s243 + $0x80] sm:$0xff]
        %v346 = vld [vmem:[%s243 + $0x88] sm:$0xff]
        %v347 = vld [vmem:[%s243 + $0x90] sm:$0xff]
        %v348 = vld [vmem:[%s243 + $0x98] sm:$0xff]
        %v349 = vld [vmem:[%s243 + $0xa0] sm:$0xff]
        %v350 = vld [vmem:[%s243 + $0xa8] sm:$0xff]
        %v351 = vld [vmem:[%s243 + $0xb0] sm:$0xff]
        %v352 = vld [vmem:[%s243 + $0xb8] sm:$0xff]
        %v353 = vld [vmem:[%s243 + $0xc0] sm:$0xff]
        %v354 = vld [vmem:[%s243 + $0xc8] sm:$0xff]
        %v355 = vld [vmem:[%s243 + $0xd0] sm:$0xff]
        %v356 = vld [vmem:[%s243 + $0xd8] sm:$0xff]
        %v357 = vld [vmem:[%s243 + $0xe0] sm:$0xff]
        %v358 = vld [vmem:[%s243 + $0xe8] sm:$0xff]
        %v359 = vld [vmem:[%s243 + $0xf0] sm:$0xff]
        %v360 = vld [vmem:[%s243 + $0xf8] sm:$0xff]
        %v361 = vld [vmem:[%s253] sm:$0xf]
        %v362 = vld [vmem:[%s253 + $0x4] sm:$0xf]
        %v363 = vld [vmem:[%s253 + $0x8] sm:$0xf]
        %v364 = vld [vmem:[%s253 + $0xc] sm:$0xf]
        %v365 = vld [vmem:[%s253 + $0x10] sm:$0xf]
        %v366 = vld [vmem:[%s253 + $0x14] sm:$0xf]
        %v367 = vld [vmem:[%s253 + $0x18] sm:$0xf]
        %v368 = vld [vmem:[%s253 + $0x1c] sm:$0xf]
        %v369 = vld [vmem:[%s253 + $0x20] sm:$0xf]
        %v370 = vld [vmem:[%s253 + $0x24] sm:$0xf]
        %v371 = vld [vmem:[%s253 + $0x28] sm:$0xf]
        %v372 = vld [vmem:[%s253 + $0x2c] sm:$0xf]
        %v373 = vld [vmem:[%s253 + $0x30] sm:$0xf]
        %v374 = vld [vmem:[%s253 + $0x34] sm:$0xf]
        %v375 = vld [vmem:[%s253 + $0x38] sm:$0xf]
        %v376 = vld [vmem:[%s253 + $0x3c] sm:$0xf]
        %v377 = vld [vmem:[%s253 + $0x40] sm:$0xf]
        %v378 = vld [vmem:[%s253 + $0x44] sm:$0xf]
        %v379 = vld [vmem:[%s253 + $0x48] sm:$0xf]
        %v380 = vld [vmem:[%s253 + $0x4c] sm:$0xf]
        %v381 = vld [vmem:[%s253 + $0x50] sm:$0xf]
        %v382 = vld [vmem:[%s253 + $0x54] sm:$0xf]
        %v383 = vld [vmem:[%s253 + $0x58] sm:$0xf]
        %v384 = vld [vmem:[%s253 + $0x5c] sm:$0xf]
        %v385 = vld [vmem:[%s253 + $0x60] sm:$0xf]
        %v386 = vld [vmem:[%s253 + $0x64] sm:$0xf]
        %v387 = vld [vmem:[%s253 + $0x68] sm:$0xf]
        %v388 = vld [vmem:[%s253 + $0x6c] sm:$0xf]
        %v389 = vld [vmem:[%s253 + $0x70] sm:$0xf]
        %v390 = vld [vmem:[%s253 + $0x74] sm:$0xf]
        %v391 = vld [vmem:[%s253 + $0x78] sm:$0xf]
        %v392 = vld [vmem:[%s253 + $0x7c] sm:$0xf]
        %v425 = vunpack.c.l.b16 %v329
        %v426 = vunpack.c.h.b16 %v329
        %v427 = vunpack.c.l.b16 %v330
        %v428 = vunpack.c.h.b16 %v330
        %v429 = vunpack.c.l.b16 %v331
        %v430 = vunpack.c.h.b16 %v331
        %v431 = vunpack.c.l.b16 %v332
        %v432 = vunpack.c.h.b16 %v332
        %v433 = vunpack.c.l.b16 %v333
        %v434 = vunpack.c.h.b16 %v333
        %v435 = vunpack.c.l.b16 %v334
        %v436 = vunpack.c.h.b16 %v334
        %v437 = vunpack.c.l.b16 %v335
        %v438 = vunpack.c.h.b16 %v335
        %v439 = vunpack.c.l.b16 %v336
        %v440 = vunpack.c.h.b16 %v336
        %v441 = vunpack.c.l.b16 %v337
        %v442 = vunpack.c.h.b16 %v337
        %v443 = vunpack.c.l.b16 %v338
        %v444 = vunpack.c.h.b16 %v338
        %v445 = vunpack.c.l.b16 %v339
        %v446 = vunpack.c.h.b16 %v339
        %v447 = vunpack.c.l.b16 %v340
        %v448 = vunpack.c.h.b16 %v340
        %v449 = vunpack.c.l.b16 %v341
        %v450 = vunpack.c.h.b16 %v341
        %v451 = vunpack.c.l.b16 %v342
        %v452 = vunpack.c.h.b16 %v342
        %v453 = vunpack.c.l.b16 %v343
        %v454 = vunpack.c.h.b16 %v343
        %v455 = vunpack.c.l.b16 %v344
        %v456 = vunpack.c.h.b16 %v344
        %v457 = vunpack.c.l.b16 %v345
        %v458 = vunpack.c.h.b16 %v345
        %v459 = vunpack.c.l.b16 %v346
        %v460 = vunpack.c.h.b16 %v346
        %v461 = vunpack.c.l.b16 %v347
        %v462 = vunpack.c.h.b16 %v347
        %v463 = vunpack.c.l.b16 %v348
        %v464 = vunpack.c.h.b16 %v348
        %v465 = vunpack.c.l.b16 %v349
        %v466 = vunpack.c.h.b16 %v349
        %v467 = vunpack.c.l.b16 %v350
        %v468 = vunpack.c.h.b16 %v350
        %v469 = vunpack.c.l.b16 %v351
        %v470 = vunpack.c.h.b16 %v351
        %v471 = vunpack.c.l.b16 %v352
        %v472 = vunpack.c.h.b16 %v352
        %v473 = vunpack.c.l.b16 %v353
        %v474 = vunpack.c.h.b16 %v353
        %v475 = vunpack.c.l.b16 %v354
        %v476 = vunpack.c.h.b16 %v354
        %v477 = vunpack.c.l.b16 %v355
        %v478 = vunpack.c.h.b16 %v355
        %v479 = vunpack.c.l.b16 %v356
        %v480 = vunpack.c.h.b16 %v356
        %v481 = vunpack.c.l.b16 %v357
        %v482 = vunpack.c.h.b16 %v357
        %v483 = vunpack.c.l.b16 %v358
        %v484 = vunpack.c.h.b16 %v358
        %v485 = vunpack.c.l.b16 %v359
        %v486 = vunpack.c.h.b16 %v359
        %v487 = vunpack.c.l.b16 %v360
        %v488 = vunpack.c.h.b16 %v360
        %v489 = vpack.c.b16 %v427, %v425
        %v490 = vpack.c.b16 %v428, %v426
        %v491 = vpack.c.b16 %v431, %v429
        %v492 = vpack.c.b16 %v432, %v430
        %v493 = vpack.c.b16 %v435, %v433
        %v494 = vpack.c.b16 %v436, %v434
        %v495 = vpack.c.b16 %v439, %v437
        %v496 = vpack.c.b16 %v440, %v438
        %v497 = vpack.c.b16 %v443, %v441
        %v498 = vpack.c.b16 %v444, %v442
        %v499 = vpack.c.b16 %v447, %v445
        %v500 = vpack.c.b16 %v448, %v446
        %v501 = vpack.c.b16 %v451, %v449
        %v502 = vpack.c.b16 %v452, %v450
        %v503 = vpack.c.b16 %v455, %v453
        %v504 = vpack.c.b16 %v456, %v454
        %v505 = vpack.c.b16 %v459, %v457
        %v506 = vpack.c.b16 %v460, %v458
        %v507 = vpack.c.b16 %v463, %v461
        %v508 = vpack.c.b16 %v464, %v462
        %v509 = vpack.c.b16 %v467, %v465
        %v510 = vpack.c.b16 %v468, %v466
        %v511 = vpack.c.b16 %v471, %v469
        %v512 = vpack.c.b16 %v472, %v470
        %v513 = vpack.c.b16 %v475, %v473
        %v514 = vpack.c.b16 %v476, %v474
        %v515 = vpack.c.b16 %v479, %v477
        %v516 = vpack.c.b16 %v480, %v478
        %v517 = vpack.c.b16 %v483, %v481
        %v518 = vpack.c.b16 %v484, %v482
        %v519 = vpack.c.b16 %v487, %v485
        %v520 = vpack.c.b16 %v488, %v486
        %v585 = vunpack.c.l.b16 %v361
        %v586 = vunpack.c.l.b16 %v362
        %v587 = vunpack.c.l.b16 %v363
        %v588 = vunpack.c.l.b16 %v364
        %v589 = vunpack.c.l.b16 %v365
        %v590 = vunpack.c.l.b16 %v366
        %v591 = vunpack.c.l.b16 %v367
        %v592 = vunpack.c.l.b16 %v368
        %v593 = vunpack.c.l.b16 %v369
        %v594 = vunpack.c.l.b16 %v370
        %v595 = vunpack.c.l.b16 %v371
        %v596 = vunpack.c.l.b16 %v372
        %v597 = vunpack.c.l.b16 %v373
        %v598 = vunpack.c.l.b16 %v374
        %v599 = vunpack.c.l.b16 %v375
        %v600 = vunpack.c.l.b16 %v376
        %v601 = vunpack.c.l.b16 %v377
        %v602 = vunpack.c.l.b16 %v378
        %v603 = vunpack.c.l.b16 %v379
        %v604 = vunpack.c.l.b16 %v380
        %v605 = vunpack.c.l.b16 %v381
        %v606 = vunpack.c.l.b16 %v382
        %v607 = vunpack.c.l.b16 %v383
        %v608 = vunpack.c.l.b16 %v384
        %v609 = vunpack.c.l.b16 %v385
        %v610 = vunpack.c.l.b16 %v386
        %v611 = vunpack.c.l.b16 %v387
        %v612 = vunpack.c.l.b16 %v388
        %v613 = vunpack.c.l.b16 %v389
        %v614 = vunpack.c.l.b16 %v390
        %v615 = vunpack.c.l.b16 %v391
        %v616 = vunpack.c.l.b16 %v392
        %v617 = vpack.c.b16 %v586, %v585
        %v618 = vpack.c.b16 %v588, %v587
        %v619 = vpack.c.b16 %v590, %v589
        %v620 = vpack.c.b16 %v592, %v591
        %v621 = vpack.c.b16 %v594, %v593
        %v622 = vpack.c.b16 %v596, %v595
        %v623 = vpack.c.b16 %v598, %v597
        %v624 = vpack.c.b16 %v600, %v599
        %v625 = vpack.c.b16 %v602, %v601
        %v626 = vpack.c.b16 %v604, %v603
        %v627 = vpack.c.b16 %v606, %v605
        %v628 = vpack.c.b16 %v608, %v607
        %v629 = vpack.c.b16 %v610, %v609
        %v630 = vpack.c.b16 %v612, %v611
        %v631 = vpack.c.b16 %v614, %v613
        %v632 = vpack.c.b16 %v616, %v615
        %649 = vmatprep.subr.bf16.mxu0 0
        %650 = vmatpush1.bf16.msra.mxu0 %v617
        %651 = vmatprep.subr.bf16.mxu0 0
        %652 = vmatpush1.bf16.msra.mxu0 %v618
        %653 = vmatprep.subr.bf16.mxu0 0
        %654 = vmatpush1.bf16.msra.mxu0 %v619
        %655 = vmatprep.subr.bf16.mxu0 0
        %656 = vmatpush1.bf16.msra.mxu0 %v620
        %657 = vmatprep.subr.bf16.mxu0 0
        %658 = vmatpush1.bf16.msra.mxu0 %v621
        %659 = vmatprep.subr.bf16.mxu0 0
        %660 = vmatpush1.bf16.msra.mxu0 %v622
        %661 = vmatprep.subr.bf16.mxu0 0
        %662 = vmatpush1.bf16.msra.mxu0 %v623
        %663 = vmatprep.subr.bf16.mxu0 0
        %664 = vmatpush1.bf16.msra.mxu0 %v624
        %665 = vmatprep.subr.bf16.mxu0 0
        %666 = vmatpush1.bf16.msra.mxu0 %v625
        %667 = vmatprep.subr.bf16.mxu0 0
        %668 = vmatpush1.bf16.msra.mxu0 %v626
        %669 = vmatprep.subr.bf16.mxu0 0
        %670 = vmatpush1.bf16.msra.mxu0 %v627
        %671 = vmatprep.subr.bf16.mxu0 0
        %672 = vmatpush1.bf16.msra.mxu0 %v628
        %673 = vmatprep.subr.bf16.mxu0 0
        %674 = vmatpush1.bf16.msra.mxu0 %v629
        %675 = vmatprep.subr.bf16.mxu0 0
        %676 = vmatpush1.bf16.msra.mxu0 %v630
        %677 = vmatprep.subr.bf16.mxu0 0
        %678 = vmatpush1.bf16.msra.mxu0 %v631
        %679 = vmatprep.subr.bf16.mxu0 0
        %680 = vmatpush1.bf16.msra.mxu0 %v632
        %681 = vmatprep.mubr.bf16.mxu0 %v490
        %682 = vmatmul.mubr.bf16.gmra.mrb[0].mxu0 %v489
        %v683 = vpop.f32.mrb[0].mxu0
        %v684 = vadd.f32 0.0, %v683
        %v685 = vpop.f32.mrb[0].mxu0
        %v686 = vpop.f32.mrb[0].mxu0
        %v687 = vadd.f32 0.0, %v686
        %v688 = vpop.f32.mrb[0].mxu0
        %689 = vmatprep.mubr.bf16.mxu0 %v492
        %690 = vmatmul.mubr.bf16.gmra.mrb[0].mxu0 %v491
        %v691 = vpop.f32.mrb[0].mxu0
        %v692 = vadd.f32 0.0, %v691
        %v693 = vpop.f32.mrb[0].mxu0
        %v694 = vpop.f32.mrb[0].mxu0
        %v695 = vadd.f32 0.0, %v694
        %v696 = vpop.f32.mrb[0].mxu0
        %697 = vmatprep.mubr.bf16.mxu0 %v494
        %698 = vmatmul.mubr.bf16.gmra.mrb[0].mxu0 %v493
        %v699 = vpop.f32.mrb[0].mxu0
        %v700 = vadd.f32 0.0, %v699
        %v701 = vpop.f32.mrb[0].mxu0
        %v702 = vpop.f32.mrb[0].mxu0
        %v703 = vadd.f32 0.0, %v702
        %v704 = vpop.f32.mrb[0].mxu0
        %705 = vmatprep.mubr.bf16.mxu0 %v496
        %706 = vmatmul.mubr.bf16.gmra.mrb[0].mxu0 %v495
        %v707 = vpop.f32.mrb[0].mxu0
        %v708 = vadd.f32 0.0, %v707
        %v709 = vpop.f32.mrb[0].mxu0
        %v710 = vpop.f32.mrb[0].mxu0
        %v711 = vadd.f32 0.0, %v710
        %v712 = vpop.f32.mrb[0].mxu0
        %713 = vmatprep.mubr.bf16.mxu0 %v498
        %714 = vmatmul.mubr.bf16.gmra.mrb[0].mxu0 %v497
        %v715 = vpop.f32.mrb[0].mxu0
        %v716 = vadd.f32 0.0, %v715
        %v717 = vpop.f32.mrb[0].mxu0
        %v718 = vpop.f32.mrb[0].mxu0
        %v719 = vadd.f32 0.0, %v718
        %v720 = vpop.f32.mrb[0].mxu0
        %721 = vmatprep.mubr.bf16.mxu0 %v500
        %722 = vmatmul.mubr.bf16.gmra.mrb[0].mxu0 %v499
        %v723 = vpop.f32.mrb[0].mxu0
        %v724 = vadd.f32 0.0, %v723
        %v725 = vpop.f32.mrb[0].mxu0
        %v726 = vpop.f32.mrb[0].mxu0
        %v727 = vadd.f32 0.0, %v726
        %v728 = vpop.f32.mrb[0].mxu0
        %729 = vmatprep.mubr.bf16.mxu0 %v502
        %730 = vmatmul.mubr.bf16.gmra.mrb[0].mxu0 %v501
        %v731 = vpop.f32.mrb[0].mxu0
        %v732 = vadd.f32 0.0, %v731
        %v733 = vpop.f32.mrb[0].mxu0
        %v734 = vpop.f32.mrb[0].mxu0
        %v735 = vadd.f32 0.0, %v734
        %v736 = vpop.f32.mrb[0].mxu0
        %737 = vmatprep.mubr.bf16.mxu0 %v504
        %738 = vmatmul.mubr.bf16.gmra.mrb[0].mxu0 %v503
        %v739 = vpop.f32.mrb[0].mxu0
        %v740 = vadd.f32 0.0, %v739
        %v741 = vpop.f32.mrb[0].mxu0
        %v742 = vpop.f32.mrb[0].mxu0
        %v743 = vadd.f32 0.0, %v742
        %v744 = vpop.f32.mrb[0].mxu0
        %745 = vmatprep.mubr.bf16.mxu0 %v506
        %746 = vmatmul.mubr.bf16.gmra.mrb[0].mxu0 %v505
        %v747 = vpop.f32.mrb[0].mxu0
        %v748 = vadd.f32 0.0, %v747
        %v749 = vpop.f32.mrb[0].mxu0
        %v750 = vpop.f32.mrb[0].mxu0
        %v751 = vadd.f32 0.0, %v750
        %v752 = vpop.f32.mrb[0].mxu0
        %753 = vmatprep.mubr.bf16.mxu0 %v508
        %754 = vmatmul.mubr.bf16.gmra.mrb[0].mxu0 %v507
        %v755 = vpop.f32.mrb[0].mxu0
        %v756 = vadd.f32 0.0, %v755
        %v757 = vpop.f32.mrb[0].mxu0
        %v758 = vpop.f32.mrb[0].mxu0
        %v759 = vadd.f32 0.0, %v758
        %v760 = vpop.f32.mrb[0].mxu0
        %761 = vmatprep.mubr.bf16.mxu0 %v510
        %762 = vmatmul.mubr.bf16.gmra.mrb[0].mxu0 %v509
        %v763 = vpop.f32.mrb[0].mxu0
        %v764 = vadd.f32 0.0, %v763
        %v765 = vpop.f32.mrb[0].mxu0
        %v766 = vpop.f32.mrb[0].mxu0
        %v767 = vadd.f32 0.0, %v766
        %v768 = vpop.f32.mrb[0].mxu0
        %769 = vmatprep.mubr.bf16.mxu0 %v512
        %770 = vmatmul.mubr.bf16.gmra.mrb[0].mxu0 %v511
        %v771 = vpop.f32.mrb[0].mxu0
        %v772 = vadd.f32 0.0, %v771
        %v773 = vpop.f32.mrb[0].mxu0
        %v774 = vpop.f32.mrb[0].mxu0
        %v775 = vadd.f32 0.0, %v774
        %v776 = vpop.f32.mrb[0].mxu0
        %777 = vmatprep.mubr.bf16.mxu0 %v514
        %778 = vmatmul.mubr.bf16.gmra.mrb[0].mxu0 %v513
        %v779 = vpop.f32.mrb[0].mxu0
        %v780 = vadd.f32 0.0, %v779
        %v781 = vpop.f32.mrb[0].mxu0
        %v782 = vpop.f32.mrb[0].mxu0
        %v783 = vadd.f32 0.0, %v782
        %v784 = vpop.f32.mrb[0].mxu0
        %785 = vmatprep.mubr.bf16.mxu0 %v516
        %786 = vmatmul.mubr.bf16.gmra.mrb[0].mxu0 %v515
        %v787 = vpop.f32.mrb[0].mxu0
        %v788 = vadd.f32 0.0, %v787
        %v789 = vpop.f32.mrb[0].mxu0
        %v790 = vpop.f32.mrb[0].mxu0
        %v791 = vadd.f32 0.0, %v790
        %v792 = vpop.f32.mrb[0].mxu0
        %793 = vmatprep.mubr.bf16.mxu0 %v518
        %794 = vmatmul.mubr.bf16.gmra.mrb[0].mxu0 %v517
        %v795 = vpop.f32.mrb[0].mxu0
        %v796 = vadd.f32 0.0, %v795
        %v797 = vpop.f32.mrb[0].mxu0
        %v798 = vpop.f32.mrb[0].mxu0
        %v799 = vadd.f32 0.0, %v798
        %v800 = vpop.f32.mrb[0].mxu0
        %801 = vmatprep.mubr.bf16.mxu0 %v520
        %802 = vmatmul.mubr.bf16.gmra.mrb[0].mxu0 %v519
        %v803 = vpop.f32.mrb[0].mxu0
        %v804 = vadd.f32 0.0, %v803
        %v805 = vpop.f32.mrb[0].mxu0
        %v806 = vpop.f32.mrb[0].mxu0
        %v807 = vadd.f32 0.0, %v806
        %v808 = vpop.f32.mrb[0].mxu0
        %809 = vdwg.mxu0
        %v810 = vadd.f32 %v297, %v684
        %v811 = vadd.f32 %v298, %v687
        %v812 = vadd.f32 %v299, %v692
        %v813 = vadd.f32 %v300, %v695
        %v814 = vadd.f32 %v301, %v700
        %v815 = vadd.f32 %v302, %v703
        %v816 = vadd.f32 %v303, %v708
        %v817 = vadd.f32 %v304, %v711
        %v818 = vadd.f32 %v305, %v716
        %v819 = vadd.f32 %v306, %v719
        %v820 = vadd.f32 %v307, %v724
        %v821 = vadd.f32 %v308, %v727
        %v822 = vadd.f32 %v309, %v732
        %v823 = vadd.f32 %v310, %v735
        %v824 = vadd.f32 %v311, %v740
        %v825 = vadd.f32 %v312, %v743
        %v826 = vadd.f32 %v313, %v748
        %v827 = vadd.f32 %v314, %v751
        %v828 = vadd.f32 %v315, %v756
        %v829 = vadd.f32 %v316, %v759
        %v830 = vadd.f32 %v317, %v764
        %v831 = vadd.f32 %v318, %v767
        %v832 = vadd.f32 %v319, %v772
        %v833 = vadd.f32 %v320, %v775
        %v834 = vadd.f32 %v321, %v780
        %v835 = vadd.f32 %v322, %v783
        %v836 = vadd.f32 %v323, %v788
        %v837 = vadd.f32 %v324, %v791
        %v838 = vadd.f32 %v325, %v796
        %v839 = vadd.f32 %v326, %v799
        %v840 = vadd.f32 %v327, %v804
        %v841 = vadd.f32 %v328, %v807
        %vm842 = vcmask 523264
        %843 = vst.msk [vmem:[#allocation2] sm:$0xff] %vm842, %v810
        %844 = vst.msk [vmem:[#allocation2 + $0x8] sm:$0xff] %vm842, %v811
        %845 = vst.msk [vmem:[#allocation2 + $0x10] sm:$0xff] %vm842, %v812
        %846 = vst.msk [vmem:[#allocation2 + $0x18] sm:$0xff] %vm842, %v813
        %847 = vst.msk [vmem:[#allocation2 + $0x20] sm:$0xff] %vm842, %v814
        %848 = vst.msk [vmem:[#allocation2 + $0x28] sm:$0xff] %vm842, %v815
        %849 = vst.msk [vmem:[#allocation2 + $0x30] sm:$0xff] %vm842, %v816
        %850 = vst.msk [vmem:[#allocation2 + $0x38] sm:$0xff] %vm842, %v817
        %851 = vst.msk [vmem:[#allocation2 + $0x40] sm:$0xff] %vm842, %v818
        %852 = vst.msk [vmem:[#allocation2 + $0x48] sm:$0xff] %vm842, %v819
        %853 = vst.msk [vmem:[#allocation2 + $0x50] sm:$0xff] %vm842, %v820
        %854 = vst.msk [vmem:[#allocation2 + $0x58] sm:$0xff] %vm842, %v821
        %855 = vst.msk [vmem:[#allocation2 + $0x60] sm:$0xff] %vm842, %v822
        %856 = vst.msk [vmem:[#allocation2 + $0x68] sm:$0xff] %vm842, %v823
        %857 = vst.msk [vmem:[#allocation2 + $0x70] sm:$0xff] %vm842, %v824
        %858 = vst.msk [vmem:[#allocation2 + $0x78] sm:$0xff] %vm842, %v825
        %859 = vst.msk [vmem:[#allocation2 + $0x80] sm:$0xff] %vm842, %v826
        %860 = vst.msk [vmem:[#allocation2 + $0x88] sm:$0xff] %vm842, %v827
        %861 = vst.msk [vmem:[#allocation2 + $0x90] sm:$0xff] %vm842, %v828
        %862 = vst.msk [vmem:[#allocation2 + $0x98] sm:$0xff] %vm842, %v829
        %863 = vst.msk [vmem:[#allocation2 + $0xa0] sm:$0xff] %vm842, %v830
        %864 = vst.msk [vmem:[#allocation2 + $0xa8] sm:$0xff] %vm842, %v831
        %865 = vst.msk [vmem:[#allocation2 + $0xb0] sm:$0xff] %vm842, %v832
        %866 = vst.msk [vmem:[#allocation2 + $0xb8] sm:$0xff] %vm842, %v833
        %867 = vst.msk [vmem:[#allocation2 + $0xc0] sm:$0xff] %vm842, %v834
        %868 = vst.msk [vmem:[#allocation2 + $0xc8] sm:$0xff] %vm842, %v835
        %869 = vst.msk [vmem:[#allocation2 + $0xd0] sm:$0xff] %vm842, %v836
        %870 = vst.msk [vmem:[#allocation2 + $0xd8] sm:$0xff] %vm842, %v837
        %871 = vst.msk [vmem:[#allocation2 + $0xe0] sm:$0xff] %vm842, %v838
        %872 = vst.msk [vmem:[#allocation2 + $0xe8] sm:$0xff] %vm842, %v839
        %873 = vst.msk [vmem:[#allocation2 + $0xf0] sm:$0xff] %vm842, %v840
        %874 = vst.msk [vmem:[#allocation2 + $0xf8] sm:$0xff] %vm842, %v841
        // Predicated region
        $region37: #{conv2d.1} parent=31 // pred_check
          %p875 = pneg %p260
        $region38: #{conv2d.1} parent=31 // pred_check_branch
          %877 = sbr.rel (%p875) target = $region40
        $region39: #{conv2d.1} parent=31 // pred_region
          %v878 = vld [vmem:[#allocation2] sm:$0xff]
          %v879 = vld [vmem:[#allocation2 + $0x8] sm:$0xff]
          %v880 = vld [vmem:[#allocation2 + $0x10] sm:$0xff]
          %v881 = vld [vmem:[#allocation2 + $0x18] sm:$0xff]
          %v882 = vld [vmem:[#allocation2 + $0x20] sm:$0xff]
          %v883 = vld [vmem:[#allocation2 + $0x28] sm:$0xff]
          %v884 = vld [vmem:[#allocation2 + $0x30] sm:$0xff]
          %v885 = vld [vmem:[#allocation2 + $0x38] sm:$0xff]
          %v886 = vld [vmem:[#allocation2 + $0x40] sm:$0xff]
          %v887 = vld [vmem:[#allocation2 + $0x48] sm:$0xff]
          %v888 = vld [vmem:[#allocation2 + $0x50] sm:$0xff]
          %v889 = vld [vmem:[#allocation2 + $0x58] sm:$0xff]
          %v890 = vld [vmem:[#allocation2 + $0x60] sm:$0xff]
          %v891 = vld [vmem:[#allocation2 + $0x68] sm:$0xff]
          %v892 = vld [vmem:[#allocation2 + $0x70] sm:$0xff]
          %v893 = vld [vmem:[#allocation2 + $0x78] sm:$0xff]
          %v894 = vld [vmem:[#allocation2 + $0x80] sm:$0xff]
          %v895 = vld [vmem:[#allocation2 + $0x88] sm:$0xff]
          %v896 = vld [vmem:[#allocation2 + $0x90] sm:$0xff]
          %v897 = vld [vmem:[#allocation2 + $0x98] sm:$0xff]
          %v898 = vld [vmem:[#allocation2 + $0xa0] sm:$0xff]
          %v899 = vld [vmem:[#allocation2 + $0xa8] sm:$0xff]
          %v900 = vld [vmem:[#allocation2 + $0xb0] sm:$0xff]
          %v901 = vld [vmem:[#allocation2 + $0xb8] sm:$0xff]
          %v902 = vld [vmem:[#allocation2 + $0xc0] sm:$0xff]
          %v903 = vld [vmem:[#allocation2 + $0xc8] sm:$0xff]
          %v904 = vld [vmem:[#allocation2 + $0xd0] sm:$0xff]
          %v905 = vld [vmem:[#allocation2 + $0xd8] sm:$0xff]
          %v906 = vld [vmem:[#allocation2 + $0xe0] sm:$0xff]
          %v907 = vld [vmem:[#allocation2 + $0xe8] sm:$0xff]
          %v908 = vld [vmem:[#allocation2 + $0xf0] sm:$0xff]
          %v909 = vld [vmem:[#allocation2 + $0xf8] sm:$0xff]
          %v910 = vld [vmem:[%s257] sm:$0x1]
          %v912 = vlaneseq
          %v913 = vshrl.u32 %v912, 7
          %v914 = vsub.s32 0, %v913
          %v915 = vrot.slane %v910, %v914
          %v917 = vadd.f32 %v878, %v915
          %v918 = vadd.f32 %v879, %v915
          %v919 = vadd.f32 %v880, %v915
          %v920 = vadd.f32 %v881, %v915
          %v921 = vadd.f32 %v882, %v915
          %v922 = vadd.f32 %v883, %v915
          %v923 = vadd.f32 %v884, %v915
          %v924 = vadd.f32 %v885, %v915
          %v925 = vadd.f32 %v886, %v915
          %v926 = vadd.f32 %v887, %v915
          %v927 = vadd.f32 %v888, %v915
          %v928 = vadd.f32 %v889, %v915
          %v929 = vadd.f32 %v890, %v915
          %v930 = vadd.f32 %v891, %v915
          %v931 = vadd.f32 %v892, %v915
          %v932 = vadd.f32 %v893, %v915
          %v933 = vadd.f32 %v894, %v915
          %v934 = vadd.f32 %v895, %v915
          %v935 = vadd.f32 %v896, %v915
          %v936 = vadd.f32 %v897, %v915
          %v937 = vadd.f32 %v898, %v915
          %v938 = vadd.f32 %v899, %v915
          %v939 = vadd.f32 %v900, %v915
          %v940 = vadd.f32 %v901, %v915
          %v941 = vadd.f32 %v902, %v915
          %v942 = vadd.f32 %v903, %v915
          %v943 = vadd.f32 %v904, %v915
          %v944 = vadd.f32 %v905, %v915
          %v945 = vadd.f32 %v906, %v915
          %v946 = vadd.f32 %v907, %v915
          %v947 = vadd.f32 %v908, %v915
          %v948 = vadd.f32 %v909, %v915
          %v949 = vmax.f32 %v917, 0.0
          %v950 = vmax.f32 %v918, 0.0
          %v951 = vmax.f32 %v919, 0.0
          %v952 = vmax.f32 %v920, 0.0
          %v953 = vmax.f32 %v921, 0.0
          %v954 = vmax.f32 %v922, 0.0
          %v955 = vmax.f32 %v923, 0.0
          %v956 = vmax.f32 %v924, 0.0
          %v957 = vmax.f32 %v925, 0.0
          %v958 = vmax.f32 %v926, 0.0
          %v959 = vmax.f32 %v927, 0.0
          %v960 = vmax.f32 %v928, 0.0
          %v961 = vmax.f32 %v929, 0.0
          %v962 = vmax.f32 %v930, 0.0
          %v963 = vmax.f32 %v931, 0.0
          %v964 = vmax.f32 %v932, 0.0
          %v965 = vmax.f32 %v933, 0.0
          %v966 = vmax.f32 %v934, 0.0
          %v967 = vmax.f32 %v935, 0.0
          %v968 = vmax.f32 %v936, 0.0
          %v969 = vmax.f32 %v937, 0.0
          %v970 = vmax.f32 %v938, 0.0
          %v971 = vmax.f32 %v939, 0.0
          %v972 = vmax.f32 %v940, 0.0
          %v973 = vmax.f32 %v941, 0.0
          %v974 = vmax.f32 %v942, 0.0
          %v975 = vmax.f32 %v943, 0.0
          %v976 = vmax.f32 %v944, 0.0
          %v977 = vmax.f32 %v945, 0.0
          %v978 = vmax.f32 %v946, 0.0
          %v979 = vmax.f32 %v947, 0.0
          %v980 = vmax.f32 %v948, 0.0
          %v981 = vpack.c.bf16 %v950, %v949
          %v982 = vpack.c.bf16 %v952, %v951
          %v983 = vpack.c.bf16 %v954, %v953
          %v984 = vpack.c.bf16 %v956, %v955
          %v985 = vpack.c.bf16 %v958, %v957
          %v986 = vpack.c.bf16 %v960, %v959
          %v987 = vpack.c.bf16 %v962, %v961
          %v988 = vpack.c.bf16 %v964, %v963
          %v989 = vpack.c.bf16 %v966, %v965
          %v990 = vpack.c.bf16 %v968, %v967
          %v991 = vpack.c.bf16 %v970, %v969
          %v992 = vpack.c.bf16 %v972, %v971
          %v993 = vpack.c.bf16 %v974, %v973
          %v994 = vpack.c.bf16 %v976, %v975
          %v995 = vpack.c.bf16 %v978, %v977
          %v996 = vpack.c.bf16 %v980, %v979
          %v1013 = vunpack.c.l.b16 %v981
          %v1014 = vunpack.c.h.b16 %v981
          %v1015 = vunpack.c.l.b16 %v982
          %v1016 = vunpack.c.h.b16 %v982
          %v1017 = vunpack.c.l.b16 %v983
          %v1018 = vunpack.c.h.b16 %v983
          %v1019 = vunpack.c.l.b16 %v984
          %v1020 = vunpack.c.h.b16 %v984
          %v1021 = vunpack.c.l.b16 %v985
          %v1022 = vunpack.c.h.b16 %v985
          %v1023 = vunpack.c.l.b16 %v986
          %v1024 = vunpack.c.h.b16 %v986
          %v1025 = vunpack.c.l.b16 %v987
          %v1026 = vunpack.c.h.b16 %v987
          %v1027 = vunpack.c.l.b16 %v988
          %v1028 = vunpack.c.h.b16 %v988
          %v1029 = vunpack.c.l.b16 %v989
          %v1030 = vunpack.c.h.b16 %v989
          %v1031 = vunpack.c.l.b16 %v990
          %v1032 = vunpack.c.h.b16 %v990
          %v1033 = vunpack.c.l.b16 %v991
          %v1034 = vunpack.c.h.b16 %v991
          %v1035 = vunpack.c.l.b16 %v992
          %v1036 = vunpack.c.h.b16 %v992
          %v1037 = vunpack.c.l.b16 %v993
          %v1038 = vunpack.c.h.b16 %v993
          %v1039 = vunpack.c.l.b16 %v994
          %v1040 = vunpack.c.h.b16 %v994
          %v1041 = vunpack.c.l.b16 %v995
          %v1042 = vunpack.c.h.b16 %v995
          %v1043 = vunpack.c.l.b16 %v996
          %v1044 = vunpack.c.h.b16 %v996
          %v1045 = vpack.c.b16 %v1013, %v1013
          %v1046 = vpack.c.b16 %v1014, %v1014
          %v1047 = vpack.c.b16 %v1015, %v1015
          %v1048 = vpack.c.b16 %v1016, %v1016
          %v1049 = vpack.c.b16 %v1017, %v1017
          %v1050 = vpack.c.b16 %v1018, %v1018
          %v1051 = vpack.c.b16 %v1019, %v1019
          %v1052 = vpack.c.b16 %v1020, %v1020
          %v1053 = vpack.c.b16 %v1021, %v1021
          %v1054 = vpack.c.b16 %v1022, %v1022
          %v1055 = vpack.c.b16 %v1023, %v1023
          %v1056 = vpack.c.b16 %v1024, %v1024
          %v1057 = vpack.c.b16 %v1025, %v1025
          %v1058 = vpack.c.b16 %v1026, %v1026
          %v1059 = vpack.c.b16 %v1027, %v1027
          %v1060 = vpack.c.b16 %v1028, %v1028
          %v1061 = vpack.c.b16 %v1029, %v1029
          %v1062 = vpack.c.b16 %v1030, %v1030
          %v1063 = vpack.c.b16 %v1031, %v1031
          %v1064 = vpack.c.b16 %v1032, %v1032
          %v1065 = vpack.c.b16 %v1033, %v1033
          %v1066 = vpack.c.b16 %v1034, %v1034
          %v1067 = vpack.c.b16 %v1035, %v1035
          %v1068 = vpack.c.b16 %v1036, %v1036
          %v1069 = vpack.c.b16 %v1037, %v1037
          %v1070 = vpack.c.b16 %v1038, %v1038
          %v1071 = vpack.c.b16 %v1039, %v1039
          %v1072 = vpack.c.b16 %v1040, %v1040
          %v1073 = vpack.c.b16 %v1041, %v1041
          %v1074 = vpack.c.b16 %v1042, %v1042
          %v1075 = vpack.c.b16 %v1043, %v1043
          %v1076 = vpack.c.b16 %v1044, %v1044
          %vm1109 = vcmask 519168
          %1110 = vst.msk [vmem:[%s233] sm:$0xf] %vm1109, %v1045
          %1111 = vst.msk [vmem:[%s233 + $0x4] sm:$0xf] %vm1109, %v1046
          %1112 = vst.msk [vmem:[%s233 + $0x8] sm:$0xf] %vm1109, %v1047
          %1113 = vst.msk [vmem:[%s233 + $0xc] sm:$0xf] %vm1109, %v1048
          %1114 = vst.msk [vmem:[%s233 + $0x10] sm:$0xf] %vm1109, %v1049
          %1115 = vst.msk [vmem:[%s233 + $0x14] sm:$0xf] %vm1109, %v1050
          %1116 = vst.msk [vmem:[%s233 + $0x18] sm:$0xf] %vm1109, %v1051
          %1117 = vst.msk [vmem:[%s233 + $0x1c] sm:$0xf] %vm1109, %v1052
          %1118 = vst.msk [vmem:[%s233 + $0x20] sm:$0xf] %vm1109, %v1053
          %1119 = vst.msk [vmem:[%s233 + $0x24] sm:$0xf] %vm1109, %v1054
          %1120 = vst.msk [vmem:[%s233 + $0x28] sm:$0xf] %vm1109, %v1055
          %1121 = vst.msk [vmem:[%s233 + $0x2c] sm:$0xf] %vm1109, %v1056
          %1122 = vst.msk [vmem:[%s233 + $0x30] sm:$0xf] %vm1109, %v1057
          %1123 = vst.msk [vmem:[%s233 + $0x34] sm:$0xf] %vm1109, %v1058
          %1124 = vst.msk [vmem:[%s233 + $0x38] sm:$0xf] %vm1109, %v1059
          %1125 = vst.msk [vmem:[%s233 + $0x3c] sm:$0xf] %vm1109, %v1060
          %1126 = vst.msk [vmem:[%s233 + $0x40] sm:$0xf] %vm1109, %v1061
          %1127 = vst.msk [vmem:[%s233 + $0x44] sm:$0xf] %vm1109, %v1062
          %1128 = vst.msk [vmem:[%s233 + $0x48] sm:$0xf] %vm1109, %v1063
          %1129 = vst.msk [vmem:[%s233 + $0x4c] sm:$0xf] %vm1109, %v1064
          %1130 = vst.msk [vmem:[%s233 + $0x50] sm:$0xf] %vm1109, %v1065
          %1131 = vst.msk [vmem:[%s233 + $0x54] sm:$0xf] %vm1109, %v1066
          %1132 = vst.msk [vmem:[%s233 + $0x58] sm:$0xf] %vm1109, %v1067
          %1133 = vst.msk [vmem:[%s233 + $0x5c] sm:$0xf] %vm1109, %v1068
          %1134 = vst.msk [vmem:[%s233 + $0x60] sm:$0xf] %vm1109, %v1069
          %1135 = vst.msk [vmem:[%s233 + $0x64] sm:$0xf] %vm1109, %v1070
          %1136 = vst.msk [vmem:[%s233 + $0x68] sm:$0xf] %vm1109, %v1071
          %1137 = vst.msk [vmem:[%s233 + $0x6c] sm:$0xf] %vm1109, %v1072
          %1138 = vst.msk [vmem:[%s233 + $0x70] sm:$0xf] %vm1109, %v1073
          %1139 = vst.msk [vmem:[%s233 + $0x74] sm:$0xf] %vm1109, %v1074
          %1140 = vst.msk [vmem:[%s233 + $0x78] sm:$0xf] %vm1109, %v1075
          %1141 = vst.msk [vmem:[%s233 + $0x7c] sm:$0xf] %vm1109, %v1076
        $region40: #{conv2d.1} parent=31 // pred_fallthru
          _
        %s1142 = sand.u32 %s128, 1
        %s1143 = scalar_lea.sflag [#allocation4], %s1142
        %s1144 = sand.u32 %s128, 1
        %s1145 = smul.addr %s1144, 128
        %s1146 = scalar_lea.vmem [#allocation3], %s1145
        // Predicated region
        $region41: #{conv2d.1} parent=31 // pred_check
          %p1147 = pneg %p138
        $region42: #{conv2d.1} parent=31 // pred_check_branch
          %1149 = sbr.rel (%p1147) target = $region44
        $region43: #{conv2d.1} parent=31 // pred_region
          %s1150 = smul.u32 32, %s22
          %s1152 = ssub.s32 2048, 2048
          %1153 = vsyncadd %s1143, %s1152
          %s1154 = sadd.s32 %s23, %s1150
          %s1155 = smul.addr %s1154, 64
          %s1156 = scalar_lea.hbm %s3, %s1155
          %s1157 = sshll.u32 %s1146, 4
          %s1158 = int_to_ptr.vmem [resolvable:$true] %s1157
          %1163 = dma.vmem_to_hbm [thread:$0]  %s1158, 2048, %s1156, %s1143, 64, 64, 4
        $region44: #{conv2d.1} parent=31 // pred_fallthru
          _
      $region32: #{conv2d.1} parent=5 // pred_fallthru
        _
      %p1164 = scmp.le.s32.totalorder 2, %s12
      // Predicated region
      $region45: #{conv2d.1} parent=5 // pred_check
        %p1165 = pneg %p1164
      $region46: #{conv2d.1} parent=5 // pred_check_branch
        %1167 = sbr.rel (%p1165) target = $region48
      $region47: #{conv2d.1} parent=5 // pred_region
        %s1168 = ssub.s32 %s12, 2
        // Predicated region
        $region49: #{conv2d.1} parent=47 // pred_check
          %p1169 = pneg %p144
        $region50: #{conv2d.1} parent=47 // pred_check_branch
          %1171 = sbr.rel (%p1169) target = $region52
        $region51: #{conv2d.1} parent=47 // pred_region
          %s1172 = sand.u32 %s129, 1
          %s1173 = scalar_lea.sflag [#allocation4], %s1172
          %s1174 = sand.u32 %s129, 1
          %s1175 = smul.addr %s1174, 128
          %s1176 = scalar_lea.vmem [#allocation3], %s1175
          %1177 = dma.done %s1173, 2048
        $region52: #{conv2d.1} parent=47 // pred_fallthru
          _
      $region48: #{conv2d.1} parent=5 // pred_fallthru
        _
    $region6: #{conv2d.1} parent=1 // loop_footer
      %s16 = sadd.s32 1, %s12
    $region7: #{conv2d.1} parent=1 // loop_footer_branch
      %11 = sbr.rel target = $region3
    $region8: #{conv2d.1} parent=1 // loop_exit
      _
    %1178 = vsyncpa [#allocation4], 1
    %s1179 = scalar_lea.sflag [#allocation4], 1
    %1180 = vsyncpa %s1179, 1

</llo_original>
